<compile_context>
chip_gen: v7x
topology: tpu7x:2x2x1
jax: 0.10.0
libtpu: 0.0.40
codegen_flags: <defaults>
</compile_context>

<pallas_src>
import functools

import jax
import jax.numpy as jnp
from jax.experimental import pallas as pl
from jax.experimental.pallas import tpu as pltpu

_LANE = 128
_SUB = 8
_MAX_BLOCK_ROWS = 2048   # (2048, 128) f32 block = 1 MiB per input per buffer
_EPS = 1e-6


def _round_up(x: int, m: int) -> int:
    return (x + m - 1) // m * m


def _pick_block_rows(rows: int, max_block_rows: int, min_divisor_rows: int = 512):
    """Largest multiple-of-8 block <= max that divides rows; else ragged cap."""
    cap = min(_round_up(max_block_rows, _SUB), _round_up(rows, _SUB))
    cap = max(cap, _SUB)
    lo = max(_SUB, min(min_divisor_rows, cap))
    for b in range(cap, lo - 1, -_SUB):
        if rows % b == 0:
            return b, False
    return cap, (rows % cap) != 0


def _hybrid_kernel(p_ref, t_ref, m_ref, out_ref, *scratch,
                   total_rows, block_rows, blocks_per_core,
                   first_edge_block, needs_edge, binary_targets):
    c = pl.program_id(0)          # core-split index ("parallel")
    i = pl.program_id(1)          # block index within this core ("arbitrary")
    s_ref = scratch[0] if scratch else None

    @pl.when(i == 0)
    def _init():
        out_ref[...] = jnp.zeros_like(out_ref)
        if s_ref is not None:
            # 0/1 partition matrix: S[r, c] = 1 iff c % 8 == r  (so S @ x is an
            # exact leading-axis fold of x into (8, 128) partial sums).
            col = jax.lax.broadcasted_iota(jnp.int32, s_ref.shape, 1)
            row = jax.lax.broadcasted_iota(jnp.int32, s_ref.shape, 0)
            s_ref[...] = jnp.where(col % _SUB == row, 1.0, 0.0).astype(jnp.float32)

    # Native-dtype loads; all arithmetic accumulates in f32.
    p = p_ref[...].astype(jnp.float32)
    t = t_ref[...].astype(jnp.float32)
    m = m_ref[...].astype(jnp.float32)

    def fold(x):
        if s_ref is not None:
            # MXU fold: vmatmul pushes use the vector-extended slot, which is
            # otherwise idle in this elementwise kernel.
            return jnp.dot(s_ref[...], x, preferred_element_type=jnp.float32)
        # VPU fallback: (block_rows, 128) -> (8, 128) via plain vreg adds.
        return jnp.sum(x.reshape(-1, _SUB, _LANE), axis=0)

    def accumulate(p, t, m):
        pc = jnp.clip(p, _EPS, 1.0 - _EPS)
        tm = t * m                       # shared by BCE and Dice
        pm = p * m
        if binary_targets:
            # Hard-label fast path: one log per element (opt-in; only valid
            # for strictly binary targets).
            bce_neg = m * jnp.log(jnp.where(t > 0.5, pc, 1.0 - pc))
        else:
            # Soft-label safe path with the mask folded in algebraically.
            bce_neg = tm * jnp.log(pc) + (m - tm) * jnp.log(1.0 - pc)
        out_ref[0, 0] -= fold(bce_neg)   # masked BCE numerator (sign absorbed)
        out_ref[0, 1] += fold(m)         # mask sum
        out_ref[0, 2] += fold(pm * t)    # dice intersection (unclipped p)
        out_ref[0, 3] += fold(pm + tm)   # dice pred-sum + target-sum (merged)

    if needs_edge:
        gb = c * blocks_per_core + i     # global block index (unclamped)
        is_edge = gb >= first_edge_block

        @pl.when(jnp.logical_not(is_edge))
        def _hot():
            accumulate(p, t, m)

        @pl.when(is_edge)
        def _edge():
            # Ragged tail / duplicated clamped block: zero all three streams
            # past the end so garbage bf16 bits (possibly NaN/Inf) cannot
            # poison the accumulators.
            row = (jax.lax.broadcasted_iota(jnp.int32, p.shape, 0)
                   + gb * block_rows)
            ok = row < total_rows
            z = jnp.zeros_like(p)
            accumulate(jnp.where(ok, p, z), jnp.where(ok, t, z),
                       jnp.where(ok, m, z))
    else:
        accumulate(p, t, m)


def hybird_v5_loss(pred, target, mask, l1: float = 1.0, *,
                   max_block_rows: int = _MAX_BLOCK_ROWS,
                   binary_targets: bool = False,
                   use_mxu_fold: bool = True,
                   num_core_splits: int = 2):
    n = pred.size
    pad = (-n) % _LANE

    def as_slab(x):
        x = x.reshape(-1)              # free metadata reshape, no copy
        if pad:
            # Rare path (total size not a multiple of 128); see TODO above.
            x = jnp.pad(x, (0, pad))
        return x.reshape(-1, _LANE)

    # target/mask may be passed as (u)int8 by the caller to cut HBM traffic
    # (kernel casts on the loaded tile); keep block_rows a multiple of 32 then.
    p2, t2, m2 = as_slab(pred), as_slab(target), as_slab(mask)
    rows = p2.shape[0]

    block_rows, ragged = _pick_block_rows(rows, max_block_rows)
    blocks_total = pl.cdiv(rows, block_rows)
    num_splits = num_core_splits if blocks_total >= num_core_splits else 1
    npb = pl.cdiv(blocks_total, num_splits)          # blocks per core
    needs_edge = ragged or (num_splits * npb != blocks_total)
    first_edge_block = blocks_total - 1 if ragged else blocks_total

    if num_splits * npb == blocks_total:
        def row_map(c, i):
            return (c * npb + i, 0)
    else:
        last = blocks_total - 1

        def row_map(c, i):
            # Clamp duplicated trailing blocks of the last core into range;
            # their contribution is zero-masked in the kernel.
            return (jnp.minimum(c * npb + i, last), 0)

    kernel = functools.partial(
        _hybrid_kernel,
        total_rows=rows, block_rows=block_rows, blocks_per_core=npb,
        first_edge_block=first_edge_block, needs_edge=needs_edge,
        binary_targets=binary_targets)

    tile_spec = pl.BlockSpec((block_rows, _LANE), row_map)
    scratch = ([pltpu.VMEM((_SUB, block_rows), jnp.float32)]
               if use_mxu_fold else [])

    n_elem = int(n)
    cost = pl.CostEstimate(
        flops=22 * n_elem,
        transcendentals=(1 if binary_targets else 2) * n_elem,
        bytes_accessed=int(p2.nbytes + t2.nbytes + m2.nbytes
                           + num_splits * 4 * _SUB * _LANE * 4))

    parts = pl.pallas_call(
        kernel,
        out_shape=jax.ShapeDtypeStruct((num_splits, 4, _SUB, _LANE), jnp.float32),
        grid_spec=pltpu.PrefetchScalarGridSpec(
            num_scalar_prefetch=0,
            grid=(num_splits, npb),
            in_specs=[tile_spec, tile_spec, tile_spec],
            out_specs=pl.BlockSpec((1, 4, _SUB, _LANE),
                                   lambda c, i: (c, 0, 0, 0)),
            scratch_shapes=scratch),
        compiler_params=pltpu.CompilerParams(
            # Core split is parallel (v7x megacore); the block axis carries the
            # running accumulator so it must stay arbitrary.
            dimension_semantics=("parallel", "arbitrary")),
        cost_estimate=cost,
    )(p2, t2, m2)

    # Tiny finalize in the wrapper: cross-core + cross-lane reduce and the
    # scalar BCE/Dice math (~8K floats; negligible).
    sums = jnp.sum(parts, axis=(0, 2, 3))            # (4,) f32
    bce_loss = sums[0] / (sums[1] + _EPS)
    dice_loss = 1.0 - 2.0 * sums[2] / (sums[3] + _EPS)
    return (bce_loss + l1 * dice_loss) / (1.0 + l1)


def _reference_loss(pred, target, mask, l1=1.0):
    p = pred.astype(jnp.float32)
    t = target.astype(jnp.float32)
    m = mask.astype(jnp.float32)
    pc = jnp.clip(p, _EPS, 1.0 - _EPS)
    bce = -(t * jnp.log(pc) + (1.0 - t) * jnp.log(1.0 - pc))
    bce_loss = jnp.sum(bce * m) / (jnp.sum(m) + _EPS)
    inter = jnp.sum(p * t * m)
    union = jnp.sum(p * m) + jnp.sum(t * m) + _EPS
    dice_loss = 1.0 - 2.0 * inter / union
    return (bce_loss + l1 * dice_loss) / (1.0 + l1)


if __name__ == "__main__":
    key = jax.random.PRNGKey(0)
    k1, k2, k3 = jax.random.split(key, 3)

    # NCHW maps, like the PyTorch module.  Native bf16 probability map and
    # bf16 {0,1} labels / mask (kernel casts to f32 on the loaded tile).
    B, C, H, W = 2, 4, 16, 16
    pred = jax.nn.sigmoid(
        jax.random.normal(k1, (B, C, H, W), jnp.float32)).astype(jnp.bfloat16)
    target = (jax.random.uniform(k2, (B, C, H, W)) > 0.5).astype(jnp.bfloat16)
    mask = (jax.random.uniform(k3, (B, C, H, W)) > 0.3).astype(jnp.bfloat16)

    # 1) Default path: MXU fold, soft-label BCE, single block.
    loss = jax.block_until_ready(hybird_v5_loss(pred, target, mask, l1=1.0))
    ref = _reference_loss(pred, target, mask, l1=1.0)
    assert jnp.allclose(loss, ref, atol=1e-4, rtol=1e-4), (loss, ref)

    # 2) Multi-block + 2-way core split + ragged tail + clamped duplicate block
    # (18 rows streamed in forced 8-row blocks: grid (2, 2), edge masking).
    H2, W2 = 16, 18
    pred2 = jax.nn.sigmoid(
        jax.random.normal(k1, (B, C, H2, W2), jnp.float32)).astype(jnp.bfloat16)
    target2 = (jax.random.uniform(k2, (B, C, H2, W2)) > 0.5).astype(jnp.bfloat16)
    mask2 = (jax.random.uniform(k3, (B, C, H2, W2)) > 0.3).astype(jnp.bfloat16)
    loss2 = jax.block_until_ready(
        hybird_v5_loss(pred2, target2, mask2, l1=1.0, max_block_rows=8))
    ref2 = _reference_loss(pred2, target2, mask2, l1=1.0)
    assert jnp.allclose(loss2, ref2, atol=1e-4, rtol=1e-4), (loss2, ref2)

    # 3) Alternate code paths: hard-label single-log BCE + VPU fold fallback
    # (targets here are exactly {0, 1}, so this matches the soft-label result).
    loss3 = jax.block_until_ready(
        hybird_v5_loss(pred, target, mask, l1=1.0,
                       binary_targets=True, use_mxu_fold=False))
    assert jnp.allclose(loss3, ref, atol=1e-4, rtol=1e-4), (loss3, ref)

    print("KERNEL_OK")
</pallas_src>

<mosaic_0001>
module attributes {stable_mosaic.version = 11 : i64} {
  func.func @_hybrid_kernel(%arg0: i32, %arg1: i32, %arg2: memref<16x128xbf16, #tpu.memory_space<vmem>>, %arg3: memref<16x128xbf16, #tpu.memory_space<vmem>>, %arg4: memref<16x128xbf16, #tpu.memory_space<vmem>>, %arg5: memref<1x4x8x128xf32, #tpu.memory_space<vmem>>, %arg6: memref<8x16xf32, #tpu.memory_space<vmem>>) attributes {dimension_semantics = [#tpu.dimension_semantics<parallel>, #tpu.dimension_semantics<arbitrary>], iteration_bounds = array<i64: 1, 1>, scalar_prefetch = 0 : i64, scratch_operands = 1 : i64, tpu.core_type = #tpu.core_type<tc>, window_params = [{transform_indices = @transform_0, window_bounds = array<i64: 16, 128>}, {transform_indices = @transform_1, window_bounds = array<i64: 16, 128>}, {transform_indices = @transform_2, window_bounds = array<i64: 16, 128>}, {transform_indices = @transform_3, window_bounds = array<i64: 1, 4, 8, 128>}]} {
    %c0_i32 = arith.constant 0 : i32
    %0 = arith.cmpi eq, %arg1, %c0_i32 : i32
    %1 = arith.extui %0 : i1 to i32
    %c0_i32_0 = arith.constant 0 : i32
    %2 = arith.cmpi ne, %1, %c0_i32_0 : i32
    scf.if %2 {
      %cst_49 = arith.constant 0.000000e+00 : f32
      %57 = vector.broadcast %cst_49 : f32 to vector<1x4x8x128xf32>
      %c0_50 = arith.constant 0 : index
      %c0_51 = arith.constant 0 : index
      %c0_52 = arith.constant 0 : index
      %c0_53 = arith.constant 0 : index
      %58 = vector.load %arg5[%c0_50, %c0_51, %c0_52, %c0_53] : memref<1x4x8x128xf32, #tpu.memory_space<vmem>>, vector<1x4x8x128xf32>
      tpu.vector_store %arg5[%c0_50, %c0_51, %c0_52, %c0_53], %57 {strides = array<i32>} : memref<1x4x8x128xf32, #tpu.memory_space<vmem>>, vector<1x4x8x128xf32>,
      %59 = tpu.iota {dimensions = array<i32: 1>} : vector<8x16xi32>
      %60 = tpu.iota {dimensions = array<i32: 0>} : vector<8x16xi32>
      %c8_i32 = arith.constant 8 : i32
      %c0_i32_54 = arith.constant 0 : i32
      %61 = arith.cmpi eq, %c8_i32, %c0_i32_54 : i32
      %c1_i32 = arith.constant 1 : i32
      %62 = arith.select %61, %c1_i32, %c8_i32 : i32
      %63 = vector.broadcast %62 : i32 to vector<8x16xi32>
      %64 = arith.remsi %59, %63 : vector<8x16xi32>
      %c0_i32_55 = arith.constant 0 : i32
      %65 = vector.broadcast %c0_i32_55 : i32 to vector<8x16xi32>
      %66 = arith.cmpi ne, %64, %65 : vector<8x16xi32>
      %c0_i32_56 = arith.constant 0 : i32
      %67 = vector.broadcast %c0_i32_56 : i32 to vector<8x16xi32>
      %68 = arith.cmpi slt, %64, %67 : vector<8x16xi32>
      %c0_i32_57 = arith.constant 0 : i32
      %69 = arith.cmpi slt, %62, %c0_i32_57 : i32
      %70 = vector.broadcast %69 : i1 to vector<8x16xi1>
      %71 = vector.broadcast %70 : vector<8x16xi1> to vector<8x16xi1>
      %72 = arith.xori %68, %71 : vector<8x16xi1>
      %73 = arith.andi %72, %66 : vector<8x16xi1>
      %74 = vector.broadcast %62 : i32 to vector<8x16xi32>
      %75 = arith.addi %64, %74 : vector<8x16xi32>
      %76 = arith.select %73, %75, %64 : vector<8x16xi1>, vector<8x16xi32>
      %77 = arith.cmpi eq, %76, %60 : vector<8x16xi32>
      %cst_58 = arith.constant 1.000000e+00 : f32
      %cst_59 = arith.constant 0.000000e+00 : f32
      %78 = vector.broadcast %cst_58 : f32 to vector<8x16xf32>
      %79 = vector.broadcast %cst_59 : f32 to vector<8x16xf32>
      %80 = arith.select %77, %78, %79 : vector<8x16xi1>, vector<8x16xf32>
      %c0_60 = arith.constant 0 : index
      %c0_61 = arith.constant 0 : index
      %81 = vector.load %arg6[%c0_60, %c0_61] : memref<8x16xf32, #tpu.memory_space<vmem>>, vector<8x16xf32>
      tpu.vector_store %arg6[%c0_60, %c0_61], %80 {strides = array<i32>} : memref<8x16xf32, #tpu.memory_space<vmem>>, vector<8x16xf32>,
    } else {
    }
    %c0 = arith.constant 0 : index
    %c0_1 = arith.constant 0 : index
    %3 = vector.load %arg2[%c0, %c0_1] : memref<16x128xbf16, #tpu.memory_space<vmem>>, vector<16x128xbf16>
    %4 = arith.extf %3 : vector<16x128xbf16> to vector<16x128xf32>
    %c0_2 = arith.constant 0 : index
    %c0_3 = arith.constant 0 : index
    %5 = vector.load %arg3[%c0_2, %c0_3] : memref<16x128xbf16, #tpu.memory_space<vmem>>, vector<16x128xbf16>
    %6 = arith.extf %5 : vector<16x128xbf16> to vector<16x128xf32>
    %c0_4 = arith.constant 0 : index
    %c0_5 = arith.constant 0 : index
    %7 = vector.load %arg4[%c0_4, %c0_5] : memref<16x128xbf16, #tpu.memory_space<vmem>>, vector<16x128xbf16>
    %8 = arith.extf %7 : vector<16x128xbf16> to vector<16x128xf32>
    %cst = arith.constant 9.99999997E-7 : f32
    %cst_6 = arith.constant 0.999998986 : f32
    %9 = vector.broadcast %cst : f32 to vector<16x128xf32>
    %10 = arith.maximumf %9, %4 : vector<16x128xf32>
    %11 = vector.broadcast %cst_6 : f32 to vector<16x128xf32>
    %12 = arith.minimumf %11, %10 : vector<16x128xf32>
    %13 = arith.mulf %6, %8 : vector<16x128xf32>
    %14 = arith.mulf %4, %8 : vector<16x128xf32>
    %15 = math.log %12 : vector<16x128xf32>
    %16 = arith.mulf %13, %15 : vector<16x128xf32>
    %17 = arith.subf %8, %13 : vector<16x128xf32>
    %cst_7 = arith.constant 1.000000e+00 : f32
    %18 = vector.broadcast %cst_7 : f32 to vector<16x128xf32>
    %19 = arith.subf %18, %12 : vector<16x128xf32>
    %20 = math.log %19 : vector<16x128xf32>
    %21 = arith.mulf %17, %20 : vector<16x128xf32>
    %22 = arith.addf %16, %21 : vector<16x128xf32>
    %c0_8 = arith.constant 0 : index
    %c0_9 = arith.constant 0 : index
    %c0_10 = arith.constant 0 : index
    %c0_11 = arith.constant 0 : index
    %23 = vector.load %arg5[%c0_8, %c0_9, %c0_10, %c0_11] : memref<1x4x8x128xf32, #tpu.memory_space<vmem>>, vector<1x1x8x128xf32>
    %24 = vector.shape_cast %23 : vector<1x1x8x128xf32> to vector<8x128xf32>
    %c0_12 = arith.constant 0 : index
    %c0_13 = arith.constant 0 : index
    %25 = vector.load %arg6[%c0_12, %c0_13] : memref<8x16xf32, #tpu.memory_space<vmem>>, vector<8x16xf32>
    %cst_14 = arith.constant dense<0.000000e+00> : vector<8x128xf32>
    %26 = tpu.matmul %25, %22, %cst_14 {dimension_numbers = #tpu.dot_dimension_numbers<[1], [0], [0], [1], [0, 0, 1, 1], [], []>} : vector<8x16xf32>, vector<16x128xf32>, vector<8x128xf32> -> vector<8x128xf32>
    %27 = arith.subf %24, %26 : vector<8x128xf32>
    %c0_15 = arith.constant 0 : index
    %c0_16 = arith.constant 0 : index
    %c0_17 = arith.constant 0 : index
    %c0_18 = arith.constant 0 : index
    %28 = vector.load %arg5[%c0_15, %c0_16, %c0_17, %c0_18] : memref<1x4x8x128xf32, #tpu.memory_space<vmem>>, vector<1x1x8x128xf32>
    %29 = vector.shape_cast %28 : vector<1x1x8x128xf32> to vector<8x128xf32>
    %30 = vector.shape_cast %27 : vector<8x128xf32> to vector<1x1x8x128xf32>
    tpu.vector_store %arg5[%c0_15, %c0_16, %c0_17, %c0_18], %30 {strides = array<i32>} : memref<1x4x8x128xf32, #tpu.memory_space<vmem>>, vector<1x1x8x128xf32>,
    %c0_19 = arith.constant 0 : index
    %c1 = arith.constant 1 : index
    %c0_20 = arith.constant 0 : index
    %c0_21 = arith.constant 0 : index
    %31 = vector.load %arg5[%c0_19, %c1, %c0_20, %c0_21] : memref<1x4x8x128xf32, #tpu.memory_space<vmem>>, vector<1x1x8x128xf32>
    %32 = vector.shape_cast %31 : vector<1x1x8x128xf32> to vector<8x128xf32>
    %c0_22 = arith.constant 0 : index
    %c0_23 = arith.constant 0 : index
    %33 = vector.load %arg6[%c0_22, %c0_23] : memref<8x16xf32, #tpu.memory_space<vmem>>, vector<8x16xf32>
    %cst_24 = arith.constant dense<0.000000e+00> : vector<8x128xf32>
    %34 = tpu.matmul %33, %8, %cst_24 {dimension_numbers = #tpu.dot_dimension_numbers<[1], [0], [0], [1], [0, 0, 1, 1], [], []>} : vector<8x16xf32>, vector<16x128xf32>, vector<8x128xf32> -> vector<8x128xf32>
    %35 = arith.addf %32, %34 : vector<8x128xf32>
    %c0_25 = arith.constant 0 : index
    %c1_26 = arith.constant 1 : index
    %c0_27 = arith.constant 0 : index
    %c0_28 = arith.constant 0 : index
    %36 = vector.load %arg5[%c0_25, %c1_26, %c0_27, %c0_28] : memref<1x4x8x128xf32, #tpu.memory_space<vmem>>, vector<1x1x8x128xf32>
    %37 = vector.shape_cast %36 : vector<1x1x8x128xf32> to vector<8x128xf32>
    %38 = vector.shape_cast %35 : vector<8x128xf32> to vector<1x1x8x128xf32>
    tpu.vector_store %arg5[%c0_25, %c1_26, %c0_27, %c0_28], %38 {strides = array<i32>} : memref<1x4x8x128xf32, #tpu.memory_space<vmem>>, vector<1x1x8x128xf32>,
    %c0_29 = arith.constant 0 : index
    %c2 = arith.constant 2 : index
    %c0_30 = arith.constant 0 : index
    %c0_31 = arith.constant 0 : index
    %39 = vector.load %arg5[%c0_29, %c2, %c0_30, %c0_31] : memref<1x4x8x128xf32, #tpu.memory_space<vmem>>, vector<1x1x8x128xf32>
    %40 = vector.shape_cast %39 : vector<1x1x8x128xf32> to vector<8x128xf32>
    %41 = arith.mulf %14, %6 : vector<16x128xf32>
    %c0_32 = arith.constant 0 : index
    %c0_33 = arith.constant 0 : index
    %42 = vector.load %arg6[%c0_32, %c0_33] : memref<8x16xf32, #tpu.memory_space<vmem>>, vector<8x16xf32>
    %cst_34 = arith.constant dense<0.000000e+00> : vector<8x128xf32>
    %43 = tpu.matmul %42, %41, %cst_34 {dimension_numbers = #tpu.dot_dimension_numbers<[1], [0], [0], [1], [0, 0, 1, 1], [], []>} : vector<8x16xf32>, vector<16x128xf32>, vector<8x128xf32> -> vector<8x128xf32>
    %44 = arith.addf %40, %43 : vector<8x128xf32>
    %c0_35 = arith.constant 0 : index
    %c2_36 = arith.constant 2 : index
    %c0_37 = arith.constant 0 : index
    %c0_38 = arith.constant 0 : index
    %45 = vector.load %arg5[%c0_35, %c2_36, %c0_37, %c0_38] : memref<1x4x8x128xf32, #tpu.memory_space<vmem>>, vector<1x1x8x128xf32>
    %46 = vector.shape_cast %45 : vector<1x1x8x128xf32> to vector<8x128xf32>
    %47 = vector.shape_cast %44 : vector<8x128xf32> to vector<1x1x8x128xf32>
    tpu.vector_store %arg5[%c0_35, %c2_36, %c0_37, %c0_38], %47 {strides = array<i32>} : memref<1x4x8x128xf32, #tpu.memory_space<vmem>>, vector<1x1x8x128xf32>,
    %c0_39 = arith.constant 0 : index
    %c3 = arith.constant 3 : index
    %c0_40 = arith.constant 0 : index
    %c0_41 = arith.constant 0 : index
    %48 = vector.load %arg5[%c0_39, %c3, %c0_40, %c0_41] : memref<1x4x8x128xf32, #tpu.memory_space<vmem>>, vector<1x1x8x128xf32>
    %49 = vector.shape_cast %48 : vector<1x1x8x128xf32> to vector<8x128xf32>
    %50 = arith.addf %14, %13 : vector<16x128xf32>
    %c0_42 = arith.constant 0 : index
    %c0_43 = arith.constant 0 : index
    %51 = vector.load %arg6[%c0_42, %c0_43] : memref<8x16xf32, #tpu.memory_space<vmem>>, vector<8x16xf32>
    %cst_44 = arith.constant dense<0.000000e+00> : vector<8x128xf32>
    %52 = tpu.matmul %51, %50, %cst_44 {dimension_numbers = #tpu.dot_dimension_numbers<[1], [0], [0], [1], [0, 0, 1, 1], [], []>} : vector<8x16xf32>, vector<16x128xf32>, vector<8x128xf32> -> vector<8x128xf32>
    %53 = arith.addf %49, %52 : vector<8x128xf32>
    %c0_45 = arith.constant 0 : index
    %c3_46 = arith.constant 3 : index
    %c0_47 = arith.constant 0 : index
    %c0_48 = arith.constant 0 : index
    %54 = vector.load %arg5[%c0_45, %c3_46, %c0_47, %c0_48] : memref<1x4x8x128xf32, #tpu.memory_space<vmem>>, vector<1x1x8x128xf32>
    %55 = vector.shape_cast %54 : vector<1x1x8x128xf32> to vector<8x128xf32>
    %56 = vector.shape_cast %53 : vector<8x128xf32> to vector<1x1x8x128xf32>
    tpu.vector_store %arg5[%c0_45, %c3_46, %c0_47, %c0_48], %56 {strides = array<i32>} : memref<1x4x8x128xf32, #tpu.memory_space<vmem>>, vector<1x1x8x128xf32>,
    return
  }
  func.func @transform_0(%arg0: i32, %arg1: i32) -> (i32, i32) {
    %c1_i32 = arith.constant 1 : i32
    %0 = arith.muli %arg0, %c1_i32 : i32
    %1 = arith.addi %0, %arg1 : i32
    %c0_i32 = arith.constant 0 : i32
    %c0_i32_0 = arith.constant 0 : i32
    return %1, %c0_i32 : i32, i32
  }
  func.func @transform_1(%arg0: i32, %arg1: i32) -> (i32, i32) {
    %c1_i32 = arith.constant 1 : i32
    %0 = arith.muli %arg0, %c1_i32 : i32
    %1 = arith.addi %0, %arg1 : i32
    %c0_i32 = arith.constant 0 : i32
    %c0_i32_0 = arith.constant 0 : i32
    return %1, %c0_i32 : i32, i32
  }
  func.func @transform_2(%arg0: i32, %arg1: i32) -> (i32, i32) {
    %c1_i32 = arith.constant 1 : i32
    %0 = arith.muli %arg0, %c1_i32 : i32
    %1 = arith.addi %0, %arg1 : i32
    %c0_i32 = arith.constant 0 : i32
    %c0_i32_0 = arith.constant 0 : i32
    return %1, %c0_i32 : i32, i32
  }
  func.func @transform_3(%arg0: i32, %arg1: i32) -> (i32, i32, i32, i32) {
    %c0_i32 = arith.constant 0 : i32
    %c0_i32_0 = arith.constant 0 : i32
    %c0_i32_1 = arith.constant 0 : i32
    %c0_i32_2 = arith.constant 0 : i32
    return %arg0, %c0_i32, %c0_i32_0, %c0_i32_1 : i32, i32, i32, i32
  }
}

</mosaic_0001>

<llo_original>
// kernel: tpu_custom_call.1
$region0: #{tpu_custom_call.1}
  #allocation0 [shape = 'u32[]', space=smem, size = 0x4, offset = 0x4, fixed_abs, tag = 'smem constant byte address 0x4 - core index']
  #allocation1 [shape = 'u32[144,128]{1,0:T(1,128)}', space=vmem, size = 0x12000, scoped, tag = 'internal scratch']
  #allocation2 [shape = 'f32[8,16]{1,0:T(8,128)}', space=vmem, size = 0x1000, scoped, tag = 'scratch operand']
  %s0 = inlined_call_operand.hbm [shape: bf16[16,128], index: 0, kind: input, shape index: {}]
  %s1 = inlined_call_operand.hbm [shape: bf16[16,128], index: 1, kind: input, shape index: {}]
  %s2 = inlined_call_operand.hbm [shape: bf16[16,128], index: 2, kind: input, shape index: {}]
  %s3 = inlined_call_operand.hbm [shape: f32[1,4,8,128], index: 3, kind: output, shape index: {}]
  %s4 = sld [smem:[#allocation0]]
  $region38: #{tpu_custom_call.1} parent=0
    _
  %s6 = ssub.s32 1, %s4
  %s7 = scalar_select 0, %s6, %s4
  $region1: #{tpu_custom_call.1} parent=0
    #allocation3 [shape = 'u8[4096]{0}', space=vmem, size = 0x1000, scoped, tag = 'input window, operand 0, single buffered']
    #allocation4 [shape = 's32[1]{0}', space=sflag, size = 0x4, scoped, tag = 'scoped memory for tpu_custom_call.1']
    #allocation5 [shape = 's32[1]{0}', space=sflag, size = 0x4, scoped, tag = 'scoped memory for tpu_custom_call.1']
    #allocation6 [shape = 'u8[4096]{0}', space=vmem, size = 0x1000, scoped, tag = 'input window, operand 1, single buffered']
    #allocation7 [shape = 's32[1]{0}', space=sflag, size = 0x4, scoped, tag = 'scoped memory for tpu_custom_call.1']
    #allocation8 [shape = 'u8[4096]{0}', space=vmem, size = 0x1000, scoped, tag = 'input window, operand 2, single buffered']
    #allocation9 [shape = 'u8[16384]{0}', space=vmem, size = 0x4000, scoped, tag = 'output window, operand 0, single buffered']
    %8 = vsyncpa [#allocation4], 0
    %9 = vsyncpa [#allocation7], 0
    %10 = vsyncpa [#allocation5], 0
    // Predicated region
    $region2: #{tpu_custom_call.1} parent=1 // pred_check
      _
    $region3: #{tpu_custom_call.1} parent=1 // pred_check_branch
      %12 = sbr.rel (0) target = $region5
    $region4: #{tpu_custom_call.1} parent=1 // pred_region
      %s13 = sadd.s32 0, 0
      %s14 = smul.u32 2, %s13
      %s16 = ssub.s32 128, 128
      %17 = vsyncadd [#allocation4], %s16
      %s18 = smul.addr %s14, 64
      %s19 = scalar_lea.hbm %s0, %s18
      %s20 = sshll.u32 [#allocation3], 4
      %s21 = int_to_ptr.vmem [resolvable:$true] %s20
      %26 = dma.hbm_to_vmem [thread:$0]  %s19, 128, %s21, [#allocation4], 64, 64, 4
    $region5: #{tpu_custom_call.1} parent=1 // pred_fallthru
      _
    // Predicated region
    $region6: #{tpu_custom_call.1} parent=1 // pred_check
      _
    $region7: #{tpu_custom_call.1} parent=1 // pred_check_branch
      %28 = sbr.rel (0) target = $region9
    $region8: #{tpu_custom_call.1} parent=1 // pred_region
      %s29 = sadd.s32 0, 0
      %s30 = smul.u32 2, %s29
      %s32 = ssub.s32 128, 128
      %33 = vsyncadd [#allocation7], %s32
      %s34 = smul.addr %s30, 64
      %s35 = scalar_lea.hbm %s1, %s34
      %s36 = sshll.u32 [#allocation6], 4
      %s37 = int_to_ptr.vmem [resolvable:$true] %s36
      %42 = dma.hbm_to_vmem [thread:$0]  %s35, 128, %s37, [#allocation7], 64, 64, 4
    $region9: #{tpu_custom_call.1} parent=1 // pred_fallthru
      _
    // Predicated region
    $region10: #{tpu_custom_call.1} parent=1 // pred_check
      _
    $region11: #{tpu_custom_call.1} parent=1 // pred_check_branch
      %44 = sbr.rel (0) target = $region13
    $region12: #{tpu_custom_call.1} parent=1 // pred_region
      %s45 = sadd.s32 0, 0
      %s46 = smul.u32 2, %s45
      %s48 = ssub.s32 128, 128
      %49 = vsyncadd [#allocation7], %s48
      %s50 = smul.addr %s46, 64
      %s51 = scalar_lea.hbm %s2, %s50
      %s52 = sshll.u32 [#allocation8], 4
      %s53 = int_to_ptr.vmem [resolvable:$true] %s52
      %58 = dma.hbm_to_vmem [thread:$0]  %s51, 128, %s53, [#allocation7], 64, 64, 4
    $region13: #{tpu_custom_call.1} parent=1 // pred_fallthru
      _
    // Predicated region
    $region14: #{tpu_custom_call.1} parent=1 // pred_check
      _
    $region15: #{tpu_custom_call.1} parent=1 // pred_check_branch
      %60 = sbr.rel (0) target = $region17
    $region16: #{tpu_custom_call.1} parent=1 // pred_region
      %61 = dma.done [#allocation4], 128
    $region17: #{tpu_custom_call.1} parent=1 // pred_fallthru
      _
    // Predicated region
    $region18: #{tpu_custom_call.1} parent=1 // pred_check
      _
    $region19: #{tpu_custom_call.1} parent=1 // pred_check_branch
      %63 = sbr.rel (0) target = $region21
    $region20: #{tpu_custom_call.1} parent=1 // pred_region
      %64 = dma.done [#allocation7], 128
    $region21: #{tpu_custom_call.1} parent=1 // pred_fallthru
      _
    // Predicated region
    $region22: #{tpu_custom_call.1} parent=1 // pred_check
      _
    $region23: #{tpu_custom_call.1} parent=1 // pred_check_branch
      %66 = sbr.rel (0) target = $region25
    $region24: #{tpu_custom_call.1} parent=1 // pred_region
      %67 = dma.done [#allocation7], 128
    $region25: #{tpu_custom_call.1} parent=1 // pred_fallthru
      _
    %s68 = sadd.s32 0, 0
    %s69 = smul.u32 2, %s68
    %s70 = sadd.s32 0, 0
    %s71 = smul.u32 2, %s70
    %s72 = sadd.s32 0, 0
    %s73 = smul.u32 2, %s72
    %p74 = scmp.eq.s32.totalorder 0, 0
    // Predicated region
    $region26: #{tpu_custom_call.1} parent=1 // pred_check
      %p75 = pneg %p74
    $region27: #{tpu_custom_call.1} parent=1 // pred_check_branch
      %77 = sbr.rel (%p75) target = $region29
    $region28: #{tpu_custom_call.1} parent=1 // pred_region
      %78 = vst [vmem:[#allocation9] sm:$0xff] 0.0
      %79 = vst [vmem:[#allocation9 + $0x8] sm:$0xff] 0.0
      %80 = vst [vmem:[#allocation9 + $0x10] sm:$0xff] 0.0
      %81 = vst [vmem:[#allocation9 + $0x18] sm:$0xff] 0.0
      %v82 = vlaneseq
      %v83 = vand.u32 %v82, 127
      %v84 = vlaneseq
      %v85 = vshrl.u32 %v84, 7
      %vm86 = vcmp.lt.s32.totalorder %v83, 0
      %v87 = vsub.s32 0, %v83
      %v88 = vsel %vm86, %v87, %v83
      %v89 = vshrl.u32 %v88, 3
      %v90 = vand.u32 %v88, 7
      %v91 = vsub.s32 0, %v90
      %v92 = vsel %vm86, %v91, %v90
      %vm93 = vcmp.ne.s32.totalorder %v92, 0
      %vm94 = vcmp.lt.s32.totalorder %v92, 0
      %vm95 = vmand %vm94, %vm93
      %v96 = vadd.s32 %v92, 8
      %v97 = vsel %vm95, %v96, %v92
      %vm98 = vcmp.eq.s32.totalorder %v97, %v85
      %v99 = vsel %vm98, 1.0, 0.0
      %vm100 = vcmask 130048
      %101 = vst.msk [vmem:[#allocation2] sm:$0xff] %vm100, %v99
    $region29: #{tpu_custom_call.1} parent=1 // pred_fallthru
      _
    %v102 = vld [vmem:[#allocation3] sm:$0xf]
    %v103 = vld [vmem:[#allocation3 + $0x4] sm:$0xf]
    %v104 = vunpack.c.l.bf16 %v102
    %v105 = vunpack.c.l.bf16 %v103
    %v106 = vld [vmem:[#allocation6] sm:$0xf]
    %v107 = vld [vmem:[#allocation6 + $0x4] sm:$0xf]
    %v108 = vunpack.c.l.bf16 %v106
    %v109 = vunpack.c.l.bf16 %v107
    %v110 = vld [vmem:[#allocation8] sm:$0xf]
    %v111 = vld [vmem:[#allocation8 + $0x4] sm:$0xf]
    %v112 = vunpack.c.l.bf16 %v110
    %v113 = vunpack.c.l.bf16 %v111
    %v114 = vmax.f32 %v104, 1e-06
    %v115 = vmax.f32 %v105, 1e-06
    %v116 = vmin.f32 %v114, 0.999999
    %v117 = vmin.f32 %v115, 0.999999
    %v118 = vmul.f32 %v108, %v112
    %v119 = vmul.f32 %v109, %v113
    %v120 = vmul.f32 %v104, %v112
    %v121 = vmul.f32 %v105, %v113
    %v122 = vlog2.pop %v116
    %v123 = vmul.f32 %v122, 0.6931472
    %v124 = vlog2.pop %v117
    %v125 = vmul.f32 %v124, 0.6931472
    %v126 = vmul.f32 %v118, %v123
    %v127 = vmul.f32 %v119, %v125
    %v128 = vsub.f32 %v112, %v118
    %v129 = vsub.f32 %v113, %v119
    %v130 = vsub.f32 1.0, %v116
    %v131 = vsub.f32 1.0, %v117
    %v132 = vlog2.pop %v130
    %v133 = vmul.f32 %v132, 0.6931472
    %v134 = vlog2.pop %v131
    %v135 = vmul.f32 %v134, 0.6931472
    %v136 = vmul.f32 %v128, %v133
    %v137 = vmul.f32 %v129, %v135
    %v138 = vadd.f32 %v126, %v136
    %v139 = vadd.f32 %v127, %v137
    %v140 = vld [vmem:[#allocation9] sm:$0xff]
    %v141 = vld [vmem:[#allocation2] sm:$0xff]
    %vm142 = vcmask 130048
    %v144 = vsel %vm142, %v141, 0
    %146 = vmatprep.subr.mxu0 0.0
    %147 = vmatpush1.msra.mxu0 %v138
    %148 = vmatprep.subr.mxu0 0.0
    %149 = vmatpush1.msra.mxu0 %v139
    %150 = vmatprep.subr.mxu0 0.0
    %151 = vmatpush1.msra.mxu0 0.0
    %152 = vmatprep.subr.mxu0 0.0
    %153 = vmatpush1.msra.mxu0 0.0
    %154 = vmatprep.subr.mxu0 0.0
    %155 = vmatpush1.msra.mxu0 0.0
    %156 = vmatprep.subr.mxu0 0.0
    %157 = vmatpush1.msra.mxu0 0.0
    %158 = vmatprep.subr.mxu0 0.0
    %159 = vmatpush1.msra.mxu0 0.0
    %160 = vmatprep.subr.mxu0 0.0
    %161 = vmatpush1.msra.mxu0 0.0
    %162 = vmatprep.subr.mxu0 0.0
    %163 = vmatpush1.msra.mxu0 0.0
    %164 = vmatprep.subr.mxu0 0.0
    %165 = vmatpush1.msra.mxu0 0.0
    %166 = vmatprep.subr.mxu0 0.0
    %167 = vmatpush1.msra.mxu0 0.0
    %168 = vmatprep.subr.mxu0 0.0
    %169 = vmatpush1.msra.mxu0 0.0
    %170 = vmatprep.subr.mxu0 0.0
    %171 = vmatpush1.msra.mxu0 0.0
    %172 = vmatprep.subr.mxu0 0.0
    %173 = vmatpush1.msra.mxu0 0.0
    %174 = vmatprep.subr.mxu0 0.0
    %175 = vmatpush1.msra.mxu0 0.0
    %176 = vmatprep.subr.mxu0 0.0
    %177 = vmatpush1.msra.mxu0 0.0
    %178 = vmatprep.subr.mxu0 0.0
    %179 = vmatpush1.msra.mxu0 0.0
    %180 = vmatprep.subr.mxu0 0.0
    %181 = vmatpush1.msra.mxu0 0.0
    %182 = vmatprep.subr.mxu0 0.0
    %183 = vmatpush1.msra.mxu0 0.0
    %184 = vmatprep.subr.mxu0 0.0
    %185 = vmatpush1.msra.mxu0 0.0
    %186 = vmatprep.subr.mxu0 0.0
    %187 = vmatpush1.msra.mxu0 0.0
    %188 = vmatprep.subr.mxu0 0.0
    %189 = vmatpush1.msra.mxu0 0.0
    %190 = vmatprep.subr.mxu0 0.0
    %191 = vmatpush1.msra.mxu0 0.0
    %192 = vmatprep.subr.mxu0 0.0
    %193 = vmatpush1.msra.mxu0 0.0
    %194 = vmatprep.subr.mxu0 0.0
    %195 = vmatpush1.msra.mxu0 0.0
    %196 = vmatprep.subr.mxu0 0.0
    %197 = vmatpush1.msra.mxu0 0.0
    %198 = vmatprep.subr.mxu0 0.0
    %199 = vmatpush1.msra.mxu0 0.0
    %200 = vmatprep.subr.mxu0 0.0
    %201 = vmatpush1.msra.mxu0 0.0
    %202 = vmatprep.subr.mxu0 0.0
    %203 = vmatpush1.msra.mxu0 0.0
    %204 = vmatprep.subr.mxu0 0.0
    %205 = vmatpush1.msra.mxu0 0.0
    %206 = vmatprep.subr.mxu0 0.0
    %207 = vmatpush1.msra.mxu0 0.0
    %208 = vmatprep.subr.mxu0 0.0
    %209 = vmatpush1.msra.mxu0 0.0
    %210 = vmatprep.mubr.f32.mxu0 0.0
    %211 = vmatmul.mubr.f32.gmra.mrb[0].mxu0 %v144
    %v212 = vpop.f32.mrb[0].mxu0
    %v213 = vadd.f32 0.0, %v212
    %v214 = vpop.f32.mrb[0].mxu0
    %215 = vdwg.mxu0
    %v216 = vsub.f32 %v140, %v213
    %217 = vst [vmem:[#allocation9] sm:$0xff] %v216
    %s218 = scalar_lea.vmem [#allocation9], 8
    %v219 = vld [vmem:[%s218] sm:$0xff]
    %v220 = vld [vmem:[#allocation2] sm:$0xff]
    %v222 = vsel %vm142, %v220, 0
    %224 = vmatprep.subr.mxu0 0.0
    %225 = vmatpush1.msra.mxu0 %v112
    %226 = vmatprep.subr.mxu0 0.0
    %227 = vmatpush1.msra.mxu0 %v113
    %228 = vmatprep.subr.mxu0 0.0
    %229 = vmatpush1.msra.mxu0 0.0
    %230 = vmatprep.subr.mxu0 0.0
    %231 = vmatpush1.msra.mxu0 0.0
    %232 = vmatprep.subr.mxu0 0.0
    %233 = vmatpush1.msra.mxu0 0.0
    %234 = vmatprep.subr.mxu0 0.0
    %235 = vmatpush1.msra.mxu0 0.0
    %236 = vmatprep.subr.mxu0 0.0
    %237 = vmatpush1.msra.mxu0 0.0
    %238 = vmatprep.subr.mxu0 0.0
    %239 = vmatpush1.msra.mxu0 0.0
    %240 = vmatprep.subr.mxu0 0.0
    %241 = vmatpush1.msra.mxu0 0.0
    %242 = vmatprep.subr.mxu0 0.0
    %243 = vmatpush1.msra.mxu0 0.0
    %244 = vmatprep.subr.mxu0 0.0
    %245 = vmatpush1.msra.mxu0 0.0
    %246 = vmatprep.subr.mxu0 0.0
    %247 = vmatpush1.msra.mxu0 0.0
    %248 = vmatprep.subr.mxu0 0.0
    %249 = vmatpush1.msra.mxu0 0.0
    %250 = vmatprep.subr.mxu0 0.0
    %251 = vmatpush1.msra.mxu0 0.0
    %252 = vmatprep.subr.mxu0 0.0
    %253 = vmatpush1.msra.mxu0 0.0
    %254 = vmatprep.subr.mxu0 0.0
    %255 = vmatpush1.msra.mxu0 0.0
    %256 = vmatprep.subr.mxu0 0.0
    %257 = vmatpush1.msra.mxu0 0.0
    %258 = vmatprep.subr.mxu0 0.0
    %259 = vmatpush1.msra.mxu0 0.0
    %260 = vmatprep.subr.mxu0 0.0
    %261 = vmatpush1.msra.mxu0 0.0
    %262 = vmatprep.subr.mxu0 0.0
    %263 = vmatpush1.msra.mxu0 0.0
    %264 = vmatprep.subr.mxu0 0.0
    %265 = vmatpush1.msra.mxu0 0.0
    %266 = vmatprep.subr.mxu0 0.0
    %267 = vmatpush1.msra.mxu0 0.0
    %268 = vmatprep.subr.mxu0 0.0
    %269 = vmatpush1.msra.mxu0 0.0
    %270 = vmatprep.subr.mxu0 0.0
    %271 = vmatpush1.msra.mxu0 0.0
    %272 = vmatprep.subr.mxu0 0.0
    %273 = vmatpush1.msra.mxu0 0.0
    %274 = vmatprep.subr.mxu0 0.0
    %275 = vmatpush1.msra.mxu0 0.0
    %276 = vmatprep.subr.mxu0 0.0
    %277 = vmatpush1.msra.mxu0 0.0
    %278 = vmatprep.subr.mxu0 0.0
    %279 = vmatpush1.msra.mxu0 0.0
    %280 = vmatprep.subr.mxu0 0.0
    %281 = vmatpush1.msra.mxu0 0.0
    %282 = vmatprep.subr.mxu0 0.0
    %283 = vmatpush1.msra.mxu0 0.0
    %284 = vmatprep.subr.mxu0 0.0
    %285 = vmatpush1.msra.mxu0 0.0
    %286 = vmatprep.subr.mxu0 0.0
    %287 = vmatpush1.msra.mxu0 0.0
    %288 = vmatprep.mubr.f32.mxu0 0.0
    %289 = vmatmul.mubr.f32.gmra.mrb[0].mxu0 %v222
    %v290 = vpop.f32.mrb[0].mxu0
    %v291 = vadd.f32 0.0, %v290
    %v292 = vpop.f32.mrb[0].mxu0
    %293 = vdwg.mxu0
    %v294 = vadd.f32 %v219, %v291
    %295 = vst [vmem:[%s218] sm:$0xff] %v294
    %s296 = scalar_lea.vmem [#allocation9], 16
    %v297 = vld [vmem:[%s296] sm:$0xff]
    %v298 = vmul.f32 %v120, %v108
    %v299 = vmul.f32 %v121, %v109
    %v300 = vld [vmem:[#allocation2] sm:$0xff]
    %v302 = vsel %vm142, %v300, 0
    %304 = vmatprep.subr.mxu0 0.0
    %305 = vmatpush1.msra.mxu0 %v298
    %306 = vmatprep.subr.mxu0 0.0
    %307 = vmatpush1.msra.mxu0 %v299
    %308 = vmatprep.subr.mxu0 0.0
    %309 = vmatpush1.msra.mxu0 0.0
    %310 = vmatprep.subr.mxu0 0.0
    %311 = vmatpush1.msra.mxu0 0.0
    %312 = vmatprep.subr.mxu0 0.0
    %313 = vmatpush1.msra.mxu0 0.0
    %314 = vmatprep.subr.mxu0 0.0
    %315 = vmatpush1.msra.mxu0 0.0
    %316 = vmatprep.subr.mxu0 0.0
    %317 = vmatpush1.msra.mxu0 0.0
    %318 = vmatprep.subr.mxu0 0.0
    %319 = vmatpush1.msra.mxu0 0.0
    %320 = vmatprep.subr.mxu0 0.0
    %321 = vmatpush1.msra.mxu0 0.0
    %322 = vmatprep.subr.mxu0 0.0
    %323 = vmatpush1.msra.mxu0 0.0
    %324 = vmatprep.subr.mxu0 0.0
    %325 = vmatpush1.msra.mxu0 0.0
    %326 = vmatprep.subr.mxu0 0.0
    %327 = vmatpush1.msra.mxu0 0.0
    %328 = vmatprep.subr.mxu0 0.0
    %329 = vmatpush1.msra.mxu0 0.0
    %330 = vmatprep.subr.mxu0 0.0
    %331 = vmatpush1.msra.mxu0 0.0
    %332 = vmatprep.subr.mxu0 0.0
    %333 = vmatpush1.msra.mxu0 0.0
    %334 = vmatprep.subr.mxu0 0.0
    %335 = vmatpush1.msra.mxu0 0.0
    %336 = vmatprep.subr.mxu0 0.0
    %337 = vmatpush1.msra.mxu0 0.0
    %338 = vmatprep.subr.mxu0 0.0
    %339 = vmatpush1.msra.mxu0 0.0
    %340 = vmatprep.subr.mxu0 0.0
    %341 = vmatpush1.msra.mxu0 0.0
    %342 = vmatprep.subr.mxu0 0.0
    %343 = vmatpush1.msra.mxu0 0.0
    %344 = vmatprep.subr.mxu0 0.0
    %345 = vmatpush1.msra.mxu0 0.0
    %346 = vmatprep.subr.mxu0 0.0
    %347 = vmatpush1.msra.mxu0 0.0
    %348 = vmatprep.subr.mxu0 0.0
    %349 = vmatpush1.msra.mxu0 0.0
    %350 = vmatprep.subr.mxu0 0.0
    %351 = vmatpush1.msra.mxu0 0.0
    %352 = vmatprep.subr.mxu0 0.0
    %353 = vmatpush1.msra.mxu0 0.0
    %354 = vmatprep.subr.mxu0 0.0
    %355 = vmatpush1.msra.mxu0 0.0
    %356 = vmatprep.subr.mxu0 0.0
    %357 = vmatpush1.msra.mxu0 0.0
    %358 = vmatprep.subr.mxu0 0.0
    %359 = vmatpush1.msra.mxu0 0.0
    %360 = vmatprep.subr.mxu0 0.0
    %361 = vmatpush1.msra.mxu0 0.0
    %362 = vmatprep.subr.mxu0 0.0
    %363 = vmatpush1.msra.mxu0 0.0
    %364 = vmatprep.subr.mxu0 0.0
    %365 = vmatpush1.msra.mxu0 0.0
    %366 = vmatprep.subr.mxu0 0.0
    %367 = vmatpush1.msra.mxu0 0.0
    %368 = vmatprep.mubr.f32.mxu0 0.0
    %369 = vmatmul.mubr.f32.gmra.mrb[0].mxu0 %v302
    %v370 = vpop.f32.mrb[0].mxu0
    %v371 = vadd.f32 0.0, %v370
    %v372 = vpop.f32.mrb[0].mxu0
    %373 = vdwg.mxu0
    %v374 = vadd.f32 %v297, %v371
    %375 = vst [vmem:[%s296] sm:$0xff] %v374
    %s376 = scalar_lea.vmem [#allocation9], 24
    %v377 = vld [vmem:[%s376] sm:$0xff]
    %v378 = vadd.f32 %v120, %v118
    %v379 = vadd.f32 %v121, %v119
    %v380 = vld [vmem:[#allocation2] sm:$0xff]
    %v382 = vsel %vm142, %v380, 0
    %384 = vmatprep.subr.mxu0 0.0
    %385 = vmatpush1.msra.mxu0 %v378
    %386 = vmatprep.subr.mxu0 0.0
    %387 = vmatpush1.msra.mxu0 %v379
    %388 = vmatprep.subr.mxu0 0.0
    %389 = vmatpush1.msra.mxu0 0.0
    %390 = vmatprep.subr.mxu0 0.0
    %391 = vmatpush1.msra.mxu0 0.0
    %392 = vmatprep.subr.mxu0 0.0
    %393 = vmatpush1.msra.mxu0 0.0
    %394 = vmatprep.subr.mxu0 0.0
    %395 = vmatpush1.msra.mxu0 0.0
    %396 = vmatprep.subr.mxu0 0.0
    %397 = vmatpush1.msra.mxu0 0.0
    %398 = vmatprep.subr.mxu0 0.0
    %399 = vmatpush1.msra.mxu0 0.0
    %400 = vmatprep.subr.mxu0 0.0
    %401 = vmatpush1.msra.mxu0 0.0
    %402 = vmatprep.subr.mxu0 0.0
    %403 = vmatpush1.msra.mxu0 0.0
    %404 = vmatprep.subr.mxu0 0.0
    %405 = vmatpush1.msra.mxu0 0.0
    %406 = vmatprep.subr.mxu0 0.0
    %407 = vmatpush1.msra.mxu0 0.0
    %408 = vmatprep.subr.mxu0 0.0
    %409 = vmatpush1.msra.mxu0 0.0
    %410 = vmatprep.subr.mxu0 0.0
    %411 = vmatpush1.msra.mxu0 0.0
    %412 = vmatprep.subr.mxu0 0.0
    %413 = vmatpush1.msra.mxu0 0.0
    %414 = vmatprep.subr.mxu0 0.0
    %415 = vmatpush1.msra.mxu0 0.0
    %416 = vmatprep.subr.mxu0 0.0
    %417 = vmatpush1.msra.mxu0 0.0
    %418 = vmatprep.subr.mxu0 0.0
    %419 = vmatpush1.msra.mxu0 0.0
    %420 = vmatprep.subr.mxu0 0.0
    %421 = vmatpush1.msra.mxu0 0.0
    %422 = vmatprep.subr.mxu0 0.0
    %423 = vmatpush1.msra.mxu0 0.0
    %424 = vmatprep.subr.mxu0 0.0
    %425 = vmatpush1.msra.mxu0 0.0
    %426 = vmatprep.subr.mxu0 0.0
    %427 = vmatpush1.msra.mxu0 0.0
    %428 = vmatprep.subr.mxu0 0.0
    %429 = vmatpush1.msra.mxu0 0.0
    %430 = vmatprep.subr.mxu0 0.0
    %431 = vmatpush1.msra.mxu0 0.0
    %432 = vmatprep.subr.mxu0 0.0
    %433 = vmatpush1.msra.mxu0 0.0
    %434 = vmatprep.subr.mxu0 0.0
    %435 = vmatpush1.msra.mxu0 0.0
    %436 = vmatprep.subr.mxu0 0.0
    %437 = vmatpush1.msra.mxu0 0.0
    %438 = vmatprep.subr.mxu0 0.0
    %439 = vmatpush1.msra.mxu0 0.0
    %440 = vmatprep.subr.mxu0 0.0
    %441 = vmatpush1.msra.mxu0 0.0
    %442 = vmatprep.subr.mxu0 0.0
    %443 = vmatpush1.msra.mxu0 0.0
    %444 = vmatprep.subr.mxu0 0.0
    %445 = vmatpush1.msra.mxu0 0.0
    %446 = vmatprep.subr.mxu0 0.0
    %447 = vmatpush1.msra.mxu0 0.0
    %448 = vmatprep.mubr.f32.mxu0 0.0
    %449 = vmatmul.mubr.f32.gmra.mrb[0].mxu0 %v382
    %v450 = vpop.f32.mrb[0].mxu0
    %v451 = vadd.f32 0.0, %v450
    %v452 = vpop.f32.mrb[0].mxu0
    %453 = vdwg.mxu0
    %v454 = vadd.f32 %v377, %v451
    %455 = vst [vmem:[%s376] sm:$0xff] %v454
    // Predicated region
    $region30: #{tpu_custom_call.1} parent=1 // pred_check
      _
    $region31: #{tpu_custom_call.1} parent=1 // pred_check_branch
      %457 = sbr.rel (0) target = $region33
    $region32: #{tpu_custom_call.1} parent=1 // pred_region
      %s459 = ssub.s32 512, 512
      %460 = vsyncadd [#allocation5], %s459
      %s461 = sshll.u32 [#allocation9], 4
      %s462 = int_to_ptr.vmem [resolvable:$true] %s461
      %467 = dma.vmem_to_hbm [thread:$0]  %s462, 512, %s3, [#allocation5], 128, 128, 8
    $region33: #{tpu_custom_call.1} parent=1 // pred_fallthru
      _
    // Predicated region
    $region34: #{tpu_custom_call.1} parent=1 // pred_check
      _
    $region35: #{tpu_custom_call.1} parent=1 // pred_check_branch
      %469 = sbr.rel (0) target = $region37
    $region36: #{tpu_custom_call.1} parent=1 // pred_region
      %470 = dma.done [#allocation5], 512
    $region37: #{tpu_custom_call.1} parent=1 // pred_fallthru
      _
    %471 = vsyncpa [#allocation4], 1
    %472 = vsyncpa [#allocation7], 1
    %473 = vsyncpa [#allocation5], 1

</llo_original>
